<compile_context>
chip_gen: v7x
topology: tpu7x:2x2x1
jax: 0.10.0
libtpu: 0.0.40
codegen_flags: <defaults>
</compile_context>

<pallas_src>
import functools

import jax
import jax.numpy as jnp
from jax.experimental import pallas as pl
from jax.experimental.pallas import tpu as pltpu

W2_WIDTH = 128  # lane width of the fused second-layer weight block (>= n_actions + 1)


def _round_up(x, m):
    return ((x + m - 1) // m) * m


def _make_kernel(l1_rows, two_hidden, n_actions):
    """Kernel factory closing over the static slab layout."""

    def kernel(x_ref, p_ref, act_ref, val_ref):
        # Layer 1 (actor & critic fused; bias folded via the ones column in x_aug).
        x = x_ref[...]                                           # [B, l1_rows]
        w1 = p_ref[:l1_rows, :]                                  # [l1_rows, 2H] (tile-aligned)
        h = jnp.dot(x, w1, preferred_element_type=jnp.float32)   # [B, 2H] f32
        h = jnp.maximum(h, 0.0)                                  # Dropout = identity (eval)

        # Layer 2: block-diagonal [2H, 128] weights + packed bias row.
        r2 = l1_rows
        w2 = p_ref[r2:r2 + two_hidden, :W2_WIDTH]                # [2H, 128] (tile-aligned)
        b2 = p_ref[r2 + two_hidden:r2 + two_hidden + 1, :W2_WIDTH]  # [1, 128]
        out = jnp.dot(h.astype(w2.dtype), w2, preferred_element_type=jnp.float32)
        out = out + b2.astype(jnp.float32)                       # f32 epilogue (v5e-safe)

        # Write action / value directly (no wrapper-side slicing).
        act_ref[...] = out[:, :n_actions]
        val_ref[...] = out[:, n_actions:n_actions + 1]

    return kernel


def pack_params(p, dtype=jnp.float32):
    """Fuse all actor+critic parameters into ONE contiguous slab (done once, host-side).

    Slab layout (width = 2*hidden lanes, rows padded to a multiple of 8):
      rows [0:D)         lanes [0:2H)        -> [wa1 | wc1]
      row  D             lanes [0:2H)        -> [ba1 | bc1]   (picked up by x's ones column)
      rows [L1:L1+H)     lanes [0:A)         -> wa2
      rows [L1+H:L1+2H)  lane  A             -> wc2
      row  L1+2H         lanes [0:A] and A   -> ba2, bc2

    dtype=jnp.bfloat16 is recommended on v6e/v7x (f32 accumulation stays in-kernel).
    """
    wa1, ba1, wa2, ba2 = p["wa1"], p["ba1"], p["wa2"], p["ba2"]
    wc1, bc1, wc2, bc2 = p["wc1"], p["bc1"], p["wc2"], p["bc2"]
    state_dim, hidden = wa1.shape
    n_actions = wa2.shape[1]
    two_hidden = 2 * hidden

    assert n_actions + 1 <= W2_WIDTH
    assert two_hidden >= W2_WIDTH
    # Keep 2H a multiple of 128 so all in-kernel row/lane slices stay tile-aligned.
    assert two_hidden % 128 == 0, "hidden_dim must keep 2*hidden a multiple of 128"

    l1_rows = _round_up(state_dim + 1, 8)             # layer-1 block rows (>= D+1, 8-aligned)
    rows = _round_up(l1_rows + two_hidden + 1, 8)     # total slab rows (8-aligned)

    slab = jnp.zeros((rows, two_hidden), jnp.float32)
    # Layer 1: [wa1 | wc1] over rows 0:D, [ba1 | bc1] on row D.
    slab = slab.at[:state_dim, :hidden].set(wa1)
    slab = slab.at[:state_dim, hidden:].set(wc1)
    slab = slab.at[state_dim, :hidden].set(ba1[0])
    slab = slab.at[state_dim, hidden:].set(bc1[0])
    # Layer 2: block-diagonal weights + packed bias row.
    r2 = l1_rows
    slab = slab.at[r2:r2 + hidden, :n_actions].set(wa2)
    slab = slab.at[r2 + hidden:r2 + two_hidden, n_actions:n_actions + 1].set(wc2)
    slab = slab.at[r2 + two_hidden, :n_actions].set(ba2[0])
    slab = slab.at[r2 + two_hidden, n_actions].set(bc2[0, 0])
    return slab.astype(dtype), n_actions


@functools.partial(jax.jit, static_argnames=("n_actions",))
def actor_critic_forward(state, slab, *, n_actions):
    """state: [B, D] f32; slab from pack_params. Returns (action [B, A], value [B, 1])."""
    B, state_dim = state.shape
    two_hidden = slab.shape[1]
    l1_rows = _round_up(state_dim + 1, 8)
    assert slab.shape[0] == _round_up(l1_rows + two_hidden + 1, 8)

    # Single cheap wrapper op: append the bias ones-column (+ zero lanes to 8-aligned width).
    cols = [state, jnp.ones((B, 1), state.dtype)]
    if l1_rows > state_dim + 1:
        cols.append(jnp.zeros((B, l1_rows - state_dim - 1), state.dtype))
    x_aug = jnp.concatenate(cols, axis=1).astype(slab.dtype)     # [B, l1_rows]

    vmem = pl.BlockSpec(memory_space=pltpu.MemorySpace.VMEM)
    action_pred, value_pred = pl.pallas_call(
        _make_kernel(l1_rows, two_hidden, n_actions),
        out_shape=(jax.ShapeDtypeStruct((B, n_actions), jnp.float32),
                   jax.ShapeDtypeStruct((B, 1), jnp.float32)),
        in_specs=(vmem, vmem),
        out_specs=(vmem, vmem),
    )(x_aug, slab)
    return action_pred, value_pred


def init_params(key, state_dim=4, hidden_dim=128, n_actions=2):
    """Deterministic synthetic parameter init (PyTorch-Linear-like scale)."""
    ks = jax.random.split(key, 8)

    def lin(kw, kb, fan_in, fan_out):
        bound = 1.0 / jnp.sqrt(fan_in)
        w = jax.random.uniform(kw, (fan_in, fan_out), jnp.float32, -bound, bound)
        b = jax.random.uniform(kb, (1, fan_out), jnp.float32, -bound, bound)
        return w, b

    wa1, ba1 = lin(ks[0], ks[1], state_dim, hidden_dim)
    wa2, ba2 = lin(ks[2], ks[3], hidden_dim, n_actions)
    wc1, bc1 = lin(ks[4], ks[5], state_dim, hidden_dim)
    wc2, bc2 = lin(ks[6], ks[7], hidden_dim, 1)
    return {
        "wa1": wa1, "ba1": ba1, "wa2": wa2, "ba2": ba2,
        "wc1": wc1, "bc1": bc1, "wc2": wc2, "bc2": bc2,
    }


def _reference_forward(state, p):
    ha = jnp.maximum(state @ p["wa1"] + p["ba1"], 0.0)
    action = ha @ p["wa2"] + p["ba2"]
    hc = jnp.maximum(state @ p["wc1"] + p["bc1"], 0.0)
    value = hc @ p["wc2"] + p["bc2"]
    return action, value


if __name__ == "__main__":
    key = jax.random.PRNGKey(0)
    k_param, k_state = jax.random.split(key)

    B, STATE_DIM, HIDDEN, N_ACTIONS = 2, 4, 128, 2
    params = init_params(k_param, STATE_DIM, HIDDEN, N_ACTIONS)
    state = jax.random.normal(k_state, (B, STATE_DIM), jnp.float32)
    ref_action, ref_value = _reference_forward(state, params)

    # f32 parameter slab (default; tight check vs the unfused pure-JAX reference).
    slab_f32, n_actions = pack_params(params, dtype=jnp.float32)
    action_pred, value_pred = actor_critic_forward(state, slab_f32, n_actions=n_actions)
    jax.block_until_ready((action_pred, value_pred))
    assert action_pred.shape == (B, N_ACTIONS)
    assert value_pred.shape == (B, 1)
    assert jnp.allclose(action_pred, ref_action, atol=1e-5, rtol=1e-5)
    assert jnp.allclose(value_pred, ref_value, atol=1e-5, rtol=1e-5)

    # bf16 parameter slab (recommended on v6e/v7x; f32 accumulation in-kernel, looser check).
    slab_bf16, _ = pack_params(params, dtype=jnp.bfloat16)
    action_bf, value_bf = actor_critic_forward(state, slab_bf16, n_actions=n_actions)
    jax.block_until_ready((action_bf, value_bf))
    assert jnp.allclose(action_bf, ref_action, atol=3e-2, rtol=3e-2)
    assert jnp.allclose(value_bf, ref_value, atol=3e-2, rtol=3e-2)

    print("KERNEL_OK")
</pallas_src>

<mosaic_0001>
module attributes {stable_mosaic.version = 11 : i64} {
  func.func @kernel(%arg0: memref<2x8xf32, #tpu.memory_space<vmem>>, %arg1: memref<272x256xf32, #tpu.memory_space<vmem>>, %arg2: memref<2x2xf32, #tpu.memory_space<vmem>>, %arg3: memref<2x1xf32, #tpu.memory_space<vmem>>) attributes {dimension_semantics = [], scalar_prefetch = 0 : i64, scratch_operands = 0 : i64, tpu.core_type = #tpu.core_type<tc>} {
    %c0 = arith.constant 0 : index
    %c0_0 = arith.constant 0 : index
    %0 = vector.load %arg0[%c0, %c0_0] : memref<2x8xf32, #tpu.memory_space<vmem>>, vector<2x8xf32>
    %c0_1 = arith.constant 0 : index
    %c0_2 = arith.constant 0 : index
    %1 = vector.load %arg1[%c0_1, %c0_2] : memref<272x256xf32, #tpu.memory_space<vmem>>, vector<8x256xf32>
    %cst = arith.constant dense<0.000000e+00> : vector<2x256xf32>
    %2 = tpu.matmul %0, %1, %cst {dimension_numbers = #tpu.dot_dimension_numbers<[1], [0], [0], [1], [0, 0, 1, 1], [], []>} : vector<2x8xf32>, vector<8x256xf32>, vector<2x256xf32> -> vector<2x256xf32>
    %cst_3 = arith.constant 0.000000e+00 : f32
    %3 = vector.broadcast %cst_3 : f32 to vector<2x256xf32>
    %4 = arith.maximumf %2, %3 : vector<2x256xf32>
    %c8 = arith.constant 8 : index
    %c0_4 = arith.constant 0 : index
    %5 = vector.load %arg1[%c8, %c0_4] : memref<272x256xf32, #tpu.memory_space<vmem>>, vector<256x128xf32>
    %c264 = arith.constant 264 : index
    %c0_5 = arith.constant 0 : index
    %6 = vector.load %arg1[%c264, %c0_5] : memref<272x256xf32, #tpu.memory_space<vmem>>, vector<1x128xf32>
    %cst_6 = arith.constant dense<0.000000e+00> : vector<2x128xf32>
    %7 = tpu.matmul %4, %5, %cst_6 {dimension_numbers = #tpu.dot_dimension_numbers<[1], [0], [0], [1], [0, 0, 1, 1], [], []>} : vector<2x256xf32>, vector<256x128xf32>, vector<2x128xf32> -> vector<2x128xf32>
    %8 = vector.broadcast %6 : vector<1x128xf32> to vector<2x128xf32>
    %9 = arith.addf %7, %8 : vector<2x128xf32>
    %10 = vector.extract_strided_slice %9 {offsets = [0, 0], sizes = [2, 2], strides = [1, 1]} : vector<2x128xf32> to vector<2x2xf32>
    %c0_7 = arith.constant 0 : index
    %c0_8 = arith.constant 0 : index
    %11 = vector.load %arg2[%c0_7, %c0_8] : memref<2x2xf32, #tpu.memory_space<vmem>>, vector<2x2xf32>
    tpu.vector_store %arg2[%c0_7, %c0_8], %10 {strides = array<i32>} : memref<2x2xf32, #tpu.memory_space<vmem>>, vector<2x2xf32>,
    %12 = vector.extract_strided_slice %9 {offsets = [0, 2], sizes = [2, 1], strides = [1, 1]} : vector<2x128xf32> to vector<2x1xf32>
    %c0_9 = arith.constant 0 : index
    %c0_10 = arith.constant 0 : index
    %13 = vector.load %arg3[%c0_9, %c0_10] : memref<2x1xf32, #tpu.memory_space<vmem>>, vector<2x1xf32>
    tpu.vector_store %arg3[%c0_9, %c0_10], %12 {strides = array<i32>} : memref<2x1xf32, #tpu.memory_space<vmem>>, vector<2x1xf32>,
    return
  }
}

</mosaic_0001>

<llo_original>
// kernel: actor_critic_forward.1
$region0: #{actor_critic_forward.1}
  #allocation0 [shape = 'u32[]', space=smem, size = 0x4, offset = 0x4, fixed_abs, tag = 'smem constant byte address 0x4 - core index']
  #allocation1 [shape = 'u32[144,128]{1,0:T(1,128)}', space=vmem, size = 0x12000, scoped, tag = 'internal scratch']
  %s0 = inlined_call_operand.vmem [shape: f32[2,8], index: 0, kind: input, shape index: {}]
  %s1 = inlined_call_operand.hbm [shape: f32[272,256], index: 1, kind: input, shape index: {}]
  %s2 = inlined_call_operand.hbm [shape: f32[2,2], index: 2, kind: output, shape index: {0}]
  %s3 = inlined_call_operand.vmem [shape: f32[2,1], index: 3, kind: output, shape index: {1}]
  %4 = xla_tuple %s2, %s3
  %s5 = sld [smem:[#allocation0]]
  $region30: #{actor_critic_forward.1} parent=0
    _
  %s7 = ssub.s32 1, %s5
  %s8 = scalar_select 0, %s7, %s5
  $region1: #{actor_critic_forward.1} parent=0
    #allocation2 [shape = 'u8[278528]{0}', space=vmem, size = 0x44000, scoped, tag = 'input window, operand 1, single buffered']
    #allocation3 [shape = 's32[1]{0}', space=sflag, size = 0x4, scoped, tag = 'scoped memory for actor_critic_forward.1']
    #allocation4 [shape = 's32[1]{0}', space=sflag, size = 0x4, scoped, tag = 'scoped memory for actor_critic_forward.1']
    #allocation5 [shape = 'u8[1024]{0}', space=vmem, size = 0x400, scoped, tag = 'output window, operand 0, single buffered']
    %9 = vsyncpa [#allocation3], 0
    %10 = vsyncpa [#allocation4], 0
    // Predicated region
    $region2: #{actor_critic_forward.1} parent=1 // pred_check
      _
    $region3: #{actor_critic_forward.1} parent=1 // pred_check_branch
      %12 = sbr.rel (0) target = $region5
    $region4: #{actor_critic_forward.1} parent=1 // pred_region
      _
    $region5: #{actor_critic_forward.1} parent=1 // pred_fallthru
      _
    // Predicated region
    $region6: #{actor_critic_forward.1} parent=1 // pred_check
      _
    $region7: #{actor_critic_forward.1} parent=1 // pred_check_branch
      %14 = sbr.rel (0) target = $region9
    $region8: #{actor_critic_forward.1} parent=1 // pred_region
      %s16 = ssub.s32 8704, 8704
      %17 = vsyncadd [#allocation3], %s16
      %s18 = sshll.u32 [#allocation2], 4
      %s19 = int_to_ptr.vmem [resolvable:$true] %s18
      %24 = dma.hbm_to_vmem [thread:$0]  %s1, 8704, %s19, [#allocation3], 256, 256, 16
    $region9: #{actor_critic_forward.1} parent=1 // pred_fallthru
      _
    // Predicated region
    $region10: #{actor_critic_forward.1} parent=1 // pred_check
      _
    $region11: #{actor_critic_forward.1} parent=1 // pred_check_branch
      %26 = sbr.rel (0) target = $region13
    $region12: #{actor_critic_forward.1} parent=1 // pred_region
      %27 = dma.done [#allocation3], 8704
    $region13: #{actor_critic_forward.1} parent=1 // pred_fallthru
      _
    %v28 = vld [vmem:[%s0] sm:$0x3]
    %v29 = vld [vmem:[#allocation2] sm:$0xff]
    %v30 = vld [vmem:[#allocation2 + $0x8] sm:$0xff]
    %vm31 = vcmask 64512
    %v33 = vsel %vm31, %v28, 0
    %35 = vmatprep.subr.mxu0 %v30
    %36 = vmatpush1.msra.mxu0 %v29
    %37 = vmatprep.subr.mxu0 0.0
    %38 = vmatpush1.msra.mxu0 0.0
    %39 = vmatprep.subr.mxu0 0.0
    %40 = vmatpush1.msra.mxu0 0.0
    %41 = vmatprep.subr.mxu0 0.0
    %42 = vmatpush1.msra.mxu0 0.0
    %43 = vmatprep.subr.mxu0 0.0
    %44 = vmatpush1.msra.mxu0 0.0
    %45 = vmatprep.subr.mxu0 0.0
    %46 = vmatpush1.msra.mxu0 0.0
    %47 = vmatprep.subr.mxu0 0.0
    %48 = vmatpush1.msra.mxu0 0.0
    %49 = vmatprep.subr.mxu0 0.0
    %50 = vmatpush1.msra.mxu0 0.0
    %51 = vmatprep.subr.mxu0 0.0
    %52 = vmatpush1.msra.mxu0 0.0
    %53 = vmatprep.subr.mxu0 0.0
    %54 = vmatpush1.msra.mxu0 0.0
    %55 = vmatprep.subr.mxu0 0.0
    %56 = vmatpush1.msra.mxu0 0.0
    %57 = vmatprep.subr.mxu0 0.0
    %58 = vmatpush1.msra.mxu0 0.0
    %59 = vmatprep.subr.mxu0 0.0
    %60 = vmatpush1.msra.mxu0 0.0
    %61 = vmatprep.subr.mxu0 0.0
    %62 = vmatpush1.msra.mxu0 0.0
    %63 = vmatprep.subr.mxu0 0.0
    %64 = vmatpush1.msra.mxu0 0.0
    %65 = vmatprep.subr.mxu0 0.0
    %66 = vmatpush1.msra.mxu0 0.0
    %67 = vmatprep.subr.mxu0 0.0
    %68 = vmatpush1.msra.mxu0 0.0
    %69 = vmatprep.subr.mxu0 0.0
    %70 = vmatpush1.msra.mxu0 0.0
    %71 = vmatprep.subr.mxu0 0.0
    %72 = vmatpush1.msra.mxu0 0.0
    %73 = vmatprep.subr.mxu0 0.0
    %74 = vmatpush1.msra.mxu0 0.0
    %75 = vmatprep.subr.mxu0 0.0
    %76 = vmatpush1.msra.mxu0 0.0
    %77 = vmatprep.subr.mxu0 0.0
    %78 = vmatpush1.msra.mxu0 0.0
    %79 = vmatprep.subr.mxu0 0.0
    %80 = vmatpush1.msra.mxu0 0.0
    %81 = vmatprep.subr.mxu0 0.0
    %82 = vmatpush1.msra.mxu0 0.0
    %83 = vmatprep.subr.mxu0 0.0
    %84 = vmatpush1.msra.mxu0 0.0
    %85 = vmatprep.subr.mxu0 0.0
    %86 = vmatpush1.msra.mxu0 0.0
    %87 = vmatprep.subr.mxu0 0.0
    %88 = vmatpush1.msra.mxu0 0.0
    %89 = vmatprep.subr.mxu0 0.0
    %90 = vmatpush1.msra.mxu0 0.0
    %91 = vmatprep.subr.mxu0 0.0
    %92 = vmatpush1.msra.mxu0 0.0
    %93 = vmatprep.subr.mxu0 0.0
    %94 = vmatpush1.msra.mxu0 0.0
    %95 = vmatprep.subr.mxu0 0.0
    %96 = vmatpush1.msra.mxu0 0.0
    %97 = vmatprep.subr.mxu0 0.0
    %98 = vmatpush1.msra.mxu0 0.0
    %99 = vmatprep.mubr.f32.mxu0 0.0
    %100 = vmatmul.mubr.f32.gmra.mrb[0].mxu0 %v33
    %v101 = vpop.f32.mrb[0].mxu0
    %v102 = vadd.f32 0.0, %v101
    %v103 = vpop.f32.mrb[0].mxu0
    %v104 = vadd.f32 0.0, %v103
    %105 = vdwg.mxu0
    %v106 = vmax.f32 %v102, 0.0
    %v107 = vmax.f32 %v104, 0.0
    %v108 = vld [vmem:[#allocation2 + $0x10] sm:$0xff]
    %v109 = vld [vmem:[#allocation2 + $0x20] sm:$0xff]
    %v110 = vld [vmem:[#allocation2 + $0x30] sm:$0xff]
    %v111 = vld [vmem:[#allocation2 + $0x40] sm:$0xff]
    %v112 = vld [vmem:[#allocation2 + $0x50] sm:$0xff]
    %v113 = vld [vmem:[#allocation2 + $0x60] sm:$0xff]
    %v114 = vld [vmem:[#allocation2 + $0x70] sm:$0xff]
    %v115 = vld [vmem:[#allocation2 + $0x80] sm:$0xff]
    %v116 = vld [vmem:[#allocation2 + $0x90] sm:$0xff]
    %v117 = vld [vmem:[#allocation2 + $0xa0] sm:$0xff]
    %v118 = vld [vmem:[#allocation2 + $0xb0] sm:$0xff]
    %v119 = vld [vmem:[#allocation2 + $0xc0] sm:$0xff]
    %v120 = vld [vmem:[#allocation2 + $0xd0] sm:$0xff]
    %v121 = vld [vmem:[#allocation2 + $0xe0] sm:$0xff]
    %v122 = vld [vmem:[#allocation2 + $0xf0] sm:$0xff]
    %v123 = vld [vmem:[#allocation2 + $0x100] sm:$0xff]
    %v124 = vld [vmem:[#allocation2 + $0x110] sm:$0xff]
    %v125 = vld [vmem:[#allocation2 + $0x120] sm:$0xff]
    %v126 = vld [vmem:[#allocation2 + $0x130] sm:$0xff]
    %v127 = vld [vmem:[#allocation2 + $0x140] sm:$0xff]
    %v128 = vld [vmem:[#allocation2 + $0x150] sm:$0xff]
    %v129 = vld [vmem:[#allocation2 + $0x160] sm:$0xff]
    %v130 = vld [vmem:[#allocation2 + $0x170] sm:$0xff]
    %v131 = vld [vmem:[#allocation2 + $0x180] sm:$0xff]
    %v132 = vld [vmem:[#allocation2 + $0x190] sm:$0xff]
    %v133 = vld [vmem:[#allocation2 + $0x1a0] sm:$0xff]
    %v134 = vld [vmem:[#allocation2 + $0x1b0] sm:$0xff]
    %v135 = vld [vmem:[#allocation2 + $0x1c0] sm:$0xff]
    %v136 = vld [vmem:[#allocation2 + $0x1d0] sm:$0xff]
    %v137 = vld [vmem:[#allocation2 + $0x1e0] sm:$0xff]
    %v138 = vld [vmem:[#allocation2 + $0x1f0] sm:$0xff]
    %v139 = vld [vmem:[#allocation2 + $0x200] sm:$0xff]
    %v140 = vld [vmem:[#allocation2 + $0x210] ss:$0 sm:$0xff]
    %141 = vmatprep.subr.mxu0 0.0
    %142 = vmatpush1.msra.mxu0 %v108
    %143 = vmatprep.subr.mxu0 0.0
    %144 = vmatpush1.msra.mxu0 %v109
    %145 = vmatprep.subr.mxu0 0.0
    %146 = vmatpush1.msra.mxu0 %v110
    %147 = vmatprep.subr.mxu0 0.0
    %148 = vmatpush1.msra.mxu0 %v111
    %149 = vmatprep.subr.mxu0 0.0
    %150 = vmatpush1.msra.mxu0 %v112
    %151 = vmatprep.subr.mxu0 0.0
    %152 = vmatpush1.msra.mxu0 %v113
    %153 = vmatprep.subr.mxu0 0.0
    %154 = vmatpush1.msra.mxu0 %v114
    %155 = vmatprep.subr.mxu0 0.0
    %156 = vmatpush1.msra.mxu0 %v115
    %157 = vmatprep.subr.mxu0 0.0
    %158 = vmatpush1.msra.mxu0 %v116
    %159 = vmatprep.subr.mxu0 0.0
    %160 = vmatpush1.msra.mxu0 %v117
    %161 = vmatprep.subr.mxu0 0.0
    %162 = vmatpush1.msra.mxu0 %v118
    %163 = vmatprep.subr.mxu0 0.0
    %164 = vmatpush1.msra.mxu0 %v119
    %165 = vmatprep.subr.mxu0 0.0
    %166 = vmatpush1.msra.mxu0 %v120
    %167 = vmatprep.subr.mxu0 0.0
    %168 = vmatpush1.msra.mxu0 %v121
    %169 = vmatprep.subr.mxu0 0.0
    %170 = vmatpush1.msra.mxu0 %v122
    %171 = vmatprep.subr.mxu0 0.0
    %172 = vmatpush1.msra.mxu0 %v123
    %173 = vmatprep.subr.mxu0 0.0
    %174 = vmatpush1.msra.mxu0 %v124
    %175 = vmatprep.subr.mxu0 0.0
    %176 = vmatpush1.msra.mxu0 %v125
    %177 = vmatprep.subr.mxu0 0.0
    %178 = vmatpush1.msra.mxu0 %v126
    %179 = vmatprep.subr.mxu0 0.0
    %180 = vmatpush1.msra.mxu0 %v127
    %181 = vmatprep.subr.mxu0 0.0
    %182 = vmatpush1.msra.mxu0 %v128
    %183 = vmatprep.subr.mxu0 0.0
    %184 = vmatpush1.msra.mxu0 %v129
    %185 = vmatprep.subr.mxu0 0.0
    %186 = vmatpush1.msra.mxu0 %v130
    %187 = vmatprep.subr.mxu0 0.0
    %188 = vmatpush1.msra.mxu0 %v131
    %189 = vmatprep.subr.mxu0 0.0
    %190 = vmatpush1.msra.mxu0 %v132
    %191 = vmatprep.subr.mxu0 0.0
    %192 = vmatpush1.msra.mxu0 %v133
    %193 = vmatprep.subr.mxu0 0.0
    %194 = vmatpush1.msra.mxu0 %v134
    %195 = vmatprep.subr.mxu0 0.0
    %196 = vmatpush1.msra.mxu0 %v135
    %197 = vmatprep.subr.mxu0 0.0
    %198 = vmatpush1.msra.mxu0 %v136
    %199 = vmatprep.subr.mxu0 0.0
    %200 = vmatpush1.msra.mxu0 %v137
    %201 = vmatprep.subr.mxu0 0.0
    %202 = vmatpush1.msra.mxu0 %v138
    %203 = vmatprep.subr.mxu0 0.0
    %204 = vmatpush1.msra.mxu0 %v139
    %205 = vmatprep.mubr.f32.mxu0 %v107
    %206 = vmatmul.mubr.f32.gmra.mrb[0].mxu0 %v106
    %v207 = vpop.f32.mrb[0].mxu0
    %v208 = vadd.f32 %v140, %v207
    %v209 = vpop.f32.mrb[0].mxu0
    %210 = vdwg.mxu0
    %vm211 = vcmask 9216
    %212 = vst.msk [vmem:[#allocation5] sm:$0x3] %vm211, %v208
    %214 = vrot.lane.b32.xlu0 %v208, 126
    %v215 = vpop.permute.xlu0 %214
    %vm217 = vcmask 1024
    %218 = vst.msk [vmem:[%s3] sm:$0x3] %vm217, %v215
    // Predicated region
    $region14: #{actor_critic_forward.1} parent=1 // pred_check
      _
    $region15: #{actor_critic_forward.1} parent=1 // pred_check_branch
      %220 = sbr.rel (0) target = $region17
    $region16: #{actor_critic_forward.1} parent=1 // pred_region
      %s222 = ssub.s32 32, 32
      %223 = vsyncadd [#allocation4], %s222
      %s225 = sshll.u32 [#allocation5], 4
      %s226 = int_to_ptr.vmem [resolvable:$true] %s225
      %228 = dma.vmem_to_hbm [thread:$0]  %s226, 32, %s2, [#allocation4]
    $region17: #{actor_critic_forward.1} parent=1 // pred_fallthru
      _
    // Predicated region
    $region18: #{actor_critic_forward.1} parent=1 // pred_check
      _
    $region19: #{actor_critic_forward.1} parent=1 // pred_check_branch
      %230 = sbr.rel (0) target = $region21
    $region20: #{actor_critic_forward.1} parent=1 // pred_region
      _
    $region21: #{actor_critic_forward.1} parent=1 // pred_fallthru
      _
    // Predicated region
    $region22: #{actor_critic_forward.1} parent=1 // pred_check
      _
    $region23: #{actor_critic_forward.1} parent=1 // pred_check_branch
      %232 = sbr.rel (0) target = $region25
    $region24: #{actor_critic_forward.1} parent=1 // pred_region
      %233 = dma.done [#allocation4], 32
    $region25: #{actor_critic_forward.1} parent=1 // pred_fallthru
      _
    // Predicated region
    $region26: #{actor_critic_forward.1} parent=1 // pred_check
      _
    $region27: #{actor_critic_forward.1} parent=1 // pred_check_branch
      %235 = sbr.rel (0) target = $region29
    $region28: #{actor_critic_forward.1} parent=1 // pred_region
      _
    $region29: #{actor_critic_forward.1} parent=1 // pred_fallthru
      _
    %236 = vsyncpa [#allocation3], 1
    %237 = vsyncpa [#allocation4], 1

</llo_original>
